<compile_context>
chip_gen: v7x
topology: tpu7x:2x2x1
jax: 0.10.0
libtpu: 0.0.40
codegen_flags: <defaults>
</compile_context>

<pallas_src>
import jax
import jax.numpy as jnp
from jax.experimental import pallas as pl
from jax.experimental.pallas import tpu as pltpu

_LANE = 128
# Per-tile budget for the streaming copy (input + output, each double-buffered
# => 4 live buffers => 32 MiB, under the explicit 48 MiB scoped-VMEM limit and
# under v7x's 64 MiB physical VMEM).
_MAX_TILE_BYTES = 8 * 1024 * 1024
_VMEM_LIMIT_BYTES = 48 * 1024 * 1024
# Widest-first lane-dense column search (all multiples of 128).
_COLS_CANDIDATES = (32768, 16384, 8192, 4096, 2048, 1024, 512, 256, 128)


def _copy_kernel(x_ref, o_ref):
    # Identity pass-through of the current tile.
    o_ref[...] = x_ref[...]


def _cost(nbytes):
    # Pure memcpy: no flops, no transcendentals, one read + one write.
    return pl.CostEstimate(flops=0, transcendentals=0, bytes_accessed=2 * nbytes)


def _sublane_multiple(dtype):
    # 8 rows per vreg tile for 4-byte dtypes, 16 for 2-byte, 32 for 1-byte.
    itemsize = jnp.dtype(dtype).itemsize
    return max(8, 32 // max(1, itemsize))


def _small_copy(x):
    """Tiny / non-lane-dense tensors: one full-array block (no (8,128) rule)."""
    return pl.pallas_call(
        _copy_kernel,
        out_shape=jax.ShapeDtypeStruct(x.shape, x.dtype),
        cost_estimate=_cost(x.size * x.dtype.itemsize),
    )(x)


def _tiled_copy_2d(x2, sub):
    """Lane-dense (rows, cols) slab: tiled, double-buffered streaming copy."""
    rows, cols = x2.shape
    bytes_per_row = cols * x2.dtype.itemsize
    # Largest sublane-aligned tile height that fits the per-tile byte budget.
    rows_cap = max(sub, (_MAX_TILE_BYTES // bytes_per_row) // sub * sub)
    tm = min(rows_cap, max(sub, (rows // sub) * sub))
    grid = (pl.cdiv(rows, tm),)
    return pl.pallas_call(
        _copy_kernel,
        out_shape=jax.ShapeDtypeStruct(x2.shape, x2.dtype),
        grid=grid,
        in_specs=[pl.BlockSpec((tm, cols), lambda i: (i, 0))],
        out_specs=pl.BlockSpec((tm, cols), lambda i: (i, 0)),
        cost_estimate=_cost(x2.size * x2.dtype.itemsize),
        compiler_params=pltpu.CompilerParams(
            vmem_limit_bytes=_VMEM_LIMIT_BYTES,
        ),
    )(x2)


def _materialize_copy(nodes):
    """Explicitly requested fresh-buffer copy of `nodes` via a Pallas kernel."""
    n = nodes.size
    if n == 0 or nodes.ndim == 0:
        # Nothing to stream; the identity is exact.
        return nodes

    # Lane-dense path: reshape (free for contiguous arrays) to (rows, cols)
    # with the widest cols multiple of 128 so stores are unmasked full vregs.
    sub = _sublane_multiple(nodes.dtype)
    if n % _LANE == 0:
        for cols in _COLS_CANDIDATES:
            if n % cols == 0 and (n // cols) >= sub:
                rows = n // cols
                y2 = _tiled_copy_2d(nodes.reshape(rows, cols), sub)
                return y2.reshape(nodes.shape)

    # Tiny or non-lane-dense shapes: single full-array block copy.
    # TODO(synk): if huge non-lane-dense copies ever matter, pad the flat view
    # to a 128-multiple in the wrapper and slice after the lane-dense copy.
    return _small_copy(nodes)


def neighbor_dict_forward(nodes, materialize=False):
    """Pallas implementation of NeighborDict.forward: returns (nodes,).

    Default is the true module semantics (identity, zero HBM traffic).  Pass
    materialize=True only if a distinct output buffer is explicitly required.
    """
    nodes = jnp.asarray(nodes)
    if not materialize:
        return (nodes,)
    return (_materialize_copy(nodes),)


class NeighborDictPallas:
    """Thin wrapper mirroring the PyTorch module's __init__ signature."""

    def __init__(self, neighbor_dict=None, max_degree=512, padding_idx=0):
        self.neighbor_dict = neighbor_dict
        self.max_degree = max_degree
        self.padding_idx = padding_idx
        # Non-trainable empty flag parameter (no compute attached).
        self.flag = jnp.zeros((0,), dtype=jnp.float32)

    def __call__(self, nodes, materialize=False):
        return neighbor_dict_forward(nodes, materialize=materialize)


if __name__ == "__main__":
    key = jax.random.PRNGKey(0)
    k1, k2 = jax.random.split(key)

    model = NeighborDictPallas(neighbor_dict=None, max_degree=512, padding_idx=0)

    # 1) Default (module-faithful) path: pure identity, no kernel, no traffic.
    nodes_small = jax.random.randint(k1, shape=(2, 16), minval=0, maxval=512,
                                     dtype=jnp.int32)
    (out_ident,) = model(nodes_small)
    out_ident = jax.block_until_ready(out_ident)
    assert out_ident.shape == nodes_small.shape
    assert out_ident.dtype == nodes_small.dtype
    assert bool(jnp.all(out_ident == nodes_small))

    # 2) Explicit materialize on a tiny, non-lane-dense tensor: exercises the
    #    single full-array-block Pallas copy.
    (out_small,) = model(nodes_small, materialize=True)
    out_small = jax.block_until_ready(out_small)
    assert out_small.shape == nodes_small.shape
    assert out_small.dtype == nodes_small.dtype
    assert bool(jnp.all(out_small == nodes_small))

    # 3) Explicit materialize on a lane-dense tensor: exercises the tiled
    #    streaming-copy path ((64, 256) int32 -> (8, 2048) lane-dense slab).
    nodes_med = jax.random.randint(k2, shape=(64, 256), minval=0, maxval=512,
                                   dtype=jnp.int32)
    (out_med,) = model(nodes_med, materialize=True)
    out_med = jax.block_until_ready(out_med)
    assert out_med.shape == nodes_med.shape
    assert out_med.dtype == nodes_med.dtype
    assert bool(jnp.all(out_med == nodes_med))

    print("KERNEL_OK")
</pallas_src>

<mosaic_0001>
module attributes {stable_mosaic.version = 11 : i64} {
  func.func @_copy_kernel(%arg0: memref<2x16xi32, #tpu.memory_space<vmem>>, %arg1: memref<2x16xi32, #tpu.memory_space<vmem>>) attributes {dimension_semantics = [], scalar_prefetch = 0 : i64, scratch_operands = 0 : i64, tpu.core_type = #tpu.core_type<tc>} {
    %c0 = arith.constant 0 : index
    %c0_0 = arith.constant 0 : index
    %0 = vector.load %arg0[%c0, %c0_0] : memref<2x16xi32, #tpu.memory_space<vmem>>, vector<2x16xi32>
    %c0_1 = arith.constant 0 : index
    %c0_2 = arith.constant 0 : index
    %1 = vector.load %arg1[%c0_1, %c0_2] : memref<2x16xi32, #tpu.memory_space<vmem>>, vector<2x16xi32>
    tpu.vector_store %arg1[%c0_1, %c0_2], %0 {strides = array<i32>} : memref<2x16xi32, #tpu.memory_space<vmem>>, vector<2x16xi32>,
    return
  }
}

</mosaic_0001>

<llo_original>
// kernel: tpu_custom_call.1
$region0: #{tpu_custom_call.1}
  #allocation0 [shape = 'u32[]', space=smem, size = 0x4, offset = 0x4, fixed_abs, tag = 'smem constant byte address 0x4 - core index']
  #allocation1 [shape = 'u32[144,128]{1,0:T(1,128)}', space=vmem, size = 0x12000, scoped, tag = 'internal scratch']
  %s0 = inlined_call_operand.hbm [shape: s32[2,16], index: 0, kind: input, shape index: {}]
  %s1 = inlined_call_operand.hbm [shape: s32[2,16], index: 1, kind: output, shape index: {}]
  %s2 = sld [smem:[#allocation0]]
  $region18: #{tpu_custom_call.1} parent=0
    _
  %s4 = ssub.s32 1, %s2
  %s5 = scalar_select 0, %s4, %s2
  $region1: #{tpu_custom_call.1} parent=0
    #allocation2 [shape = 'u8[1024]{0}', space=vmem, size = 0x400, scoped, tag = 'input window, operand 0, single buffered']
    #allocation3 [shape = 's32[1]{0}', space=sflag, size = 0x4, scoped, tag = 'scoped memory for tpu_custom_call.1']
    #allocation4 [shape = 's32[1]{0}', space=sflag, size = 0x4, scoped, tag = 'scoped memory for tpu_custom_call.1']
    #allocation5 [shape = 'u8[1024]{0}', space=vmem, size = 0x400, scoped, tag = 'output window, operand 0, single buffered']
    %6 = vsyncpa [#allocation3], 0
    %7 = vsyncpa [#allocation4], 0
    // Predicated region
    $region2: #{tpu_custom_call.1} parent=1 // pred_check
      _
    $region3: #{tpu_custom_call.1} parent=1 // pred_check_branch
      %9 = sbr.rel (0) target = $region5
    $region4: #{tpu_custom_call.1} parent=1 // pred_region
      %s11 = ssub.s32 32, 32
      %12 = vsyncadd [#allocation3], %s11
      %s14 = sshll.u32 [#allocation2], 4
      %s15 = int_to_ptr.vmem [resolvable:$true] %s14
      %17 = dma.hbm_to_vmem [thread:$0]  %s0, 32, %s15, [#allocation3]
    $region5: #{tpu_custom_call.1} parent=1 // pred_fallthru
      _
    // Predicated region
    $region6: #{tpu_custom_call.1} parent=1 // pred_check
      _
    $region7: #{tpu_custom_call.1} parent=1 // pred_check_branch
      %19 = sbr.rel (0) target = $region9
    $region8: #{tpu_custom_call.1} parent=1 // pred_region
      %20 = dma.done [#allocation3], 32
    $region9: #{tpu_custom_call.1} parent=1 // pred_fallthru
      _
    %v21 = vld [vmem:[#allocation2] sm:$0x3]
    %vm22 = vcmask 123904
    %23 = vst.msk [vmem:[#allocation5] sm:$0x3] %vm22, %v21
    // Predicated region
    $region10: #{tpu_custom_call.1} parent=1 // pred_check
      _
    $region11: #{tpu_custom_call.1} parent=1 // pred_check_branch
      %25 = sbr.rel (0) target = $region13
    $region12: #{tpu_custom_call.1} parent=1 // pred_region
      %s27 = ssub.s32 32, 32
      %28 = vsyncadd [#allocation4], %s27
      %s30 = sshll.u32 [#allocation5], 4
      %s31 = int_to_ptr.vmem [resolvable:$true] %s30
      %33 = dma.vmem_to_hbm [thread:$0]  %s31, 32, %s1, [#allocation4]
    $region13: #{tpu_custom_call.1} parent=1 // pred_fallthru
      _
    // Predicated region
    $region14: #{tpu_custom_call.1} parent=1 // pred_check
      _
    $region15: #{tpu_custom_call.1} parent=1 // pred_check_branch
      %35 = sbr.rel (0) target = $region17
    $region16: #{tpu_custom_call.1} parent=1 // pred_region
      %36 = dma.done [#allocation4], 32
    $region17: #{tpu_custom_call.1} parent=1 // pred_fallthru
      _
    %37 = vsyncpa [#allocation3], 1
    %38 = vsyncpa [#allocation4], 1

</llo_original>
